<compile_context>
chip_gen: v5e
topology: v5e:2x2
jax: 0.10.0
libtpu: 0.0.40
codegen_flags: <defaults>
</compile_context>

<pallas_src>
import numpy as np
import jax
import jax.numpy as jnp
from jax.experimental import pallas as pl
from jax.experimental.pallas import tpu as pltpu

LN_EPS = 1e-5


def _cdiv(a, b):
    return -(-a // b)


# ------------------------------- Pallas kernel --------------------------------
def _patch_merge_ln_reduce_kernel(x_ref, g_ref, b_ref, w_ref, o_ref):
    # x_ref : (bh, 2, Wp, 2C)   bh H-rows of output, h-parity, Wp W-cols,
    #                           features = [w-even C | w-odd C]
    # g_ref, b_ref : (2, 2C)    LayerNorm affine, permuted to the data layout
    # w_ref : (2, 2C, 2Cout)    reduction weight, permuted + split per h-parity
    # o_ref : (bh*Wp, 2Cout)
    bh, _, Wp, C2 = x_ref.shape
    R = bh * Wp

    x = x_ref[...].astype(jnp.float32)            # (bh, 2, Wp, 2C)
    xa = x[:, 0, :, :].reshape(R, C2)             # h-even half: [x0 | x2]
    xb = x[:, 1, :, :].reshape(R, C2)             # h-odd  half: [x1 | x3]

    inv_n = 1.0 / (2.0 * C2)                      # 1 / (4*dim)
    mu = (jnp.sum(xa, axis=-1, keepdims=True)
          + jnp.sum(xb, axis=-1, keepdims=True)) * inv_n
    da = xa - mu
    db = xb - mu
    var = (jnp.sum(da * da, axis=-1, keepdims=True)
           + jnp.sum(db * db, axis=-1, keepdims=True)) * inv_n
    rstd = jax.lax.rsqrt(var + LN_EPS)

    na = da * rstd * g_ref[0] + b_ref[0]
    nb = db * rstd * g_ref[1] + b_ref[1]

    acc = jnp.dot(na, w_ref[0], preferred_element_type=jnp.float32)
    acc = acc + jnp.dot(nb, w_ref[1], preferred_element_type=jnp.float32)
    o_ref[...] = acc.astype(o_ref.dtype)


# --------------------------------- wrapper -------------------------------------
def patch_merging_pallas(x, norm_w, norm_b, reduction_w):
    """PatchMerging forward.

    x            : (B, H, W, C)
    norm_w/norm_b: (4C,) LayerNorm affine params
    reduction_w  : (2C, 4C) PyTorch nn.Linear weight (no bias)
    returns      : (B, ceil(H/2), ceil(W/2), 2C)
    """
    B, H, W, C = x.shape
    D = C
    C2 = 2 * D          # per-half feature width seen by the kernel
    C2out = 2 * D       # output channels
    Ho, Wo = _cdiv(H, 2), _cdiv(W, 2)

    # --- tiling choices --------------------------------------------------------
    Wp = _cdiv(Wo, 8) * 8                          # sublane-align Wo (free in-kernel flatten)
    bytes_per_row = 4 * D * 4                      # merged-row footprint (4C f32)
    target_rows = max(8, min(512, (2 * 1024 * 1024) // max(1, bytes_per_row)))
    nhb = min(Ho, max(1, _cdiv(Ho * Wp, target_rows)))
    if B * nhb < 2 and Ho > 1:                     # make sure both TensorCores get work
        nhb = min(2, Ho)
    bh = _cdiv(Ho, nhb)
    nhb = _cdiv(Ho, bh)
    Ho_pad = nhb * bh

    # --- padding: parity pad fused with tile-alignment pad (no-op when aligned)
    pad_h = 2 * Ho_pad - H
    pad_w = 2 * Wp - W
    xp = x
    if pad_h or pad_w:
        xp = jnp.pad(x, ((0, 0), (0, pad_h), (0, pad_w), (0, 0)))

    # Free (bitcast) view: (B, 2Ho, 2Wp, C) -> (B*Ho, 2, Wp, 2C)
    v = xp.reshape(B * Ho_pad, 2, Wp, C2)

    # --- fold the 2x2 concat permutation into the params -----------------------
    # PyTorch feature order is [x0, x1, x2, x3]; our halves are [x0|x2] and [x1|x3].
    # LN stats are permutation invariant, so permute gamma/beta/weight rows once
    # here (tiny, param-sized) instead of rearranging activations in HBM.
    def _split_param(p):                           # (4D,) -> (2, 2D)
        return jnp.stack([jnp.concatenate([p[0:D], p[2 * D:3 * D]]),
                          jnp.concatenate([p[D:2 * D], p[3 * D:4 * D]])])

    gamma2 = _split_param(norm_w)
    beta2 = _split_param(norm_b)
    Wt = reduction_w.T                             # (4D, 2D), lane-dense
    w2 = jnp.stack([jnp.concatenate([Wt[0:D], Wt[2 * D:3 * D]], axis=0),
                    jnp.concatenate([Wt[D:2 * D], Wt[3 * D:4 * D]], axis=0)])

    nblocks = B * nhb
    Mp = B * Ho_pad * Wp

    out2d = pl.pallas_call(
        _patch_merge_ln_reduce_kernel,
        out_shape=jax.ShapeDtypeStruct((Mp, C2out), x.dtype),
        grid=(nblocks,),
        in_specs=[
            pl.BlockSpec((bh, 2, Wp, C2), lambda i: (i, 0, 0, 0)),   # activations (contiguous DMA)
            pl.BlockSpec((2, C2), lambda i: (0, 0)),                 # LN gamma (VMEM resident)
            pl.BlockSpec((2, C2), lambda i: (0, 0)),                 # LN beta
            pl.BlockSpec((2, C2, C2out), lambda i: (0, 0, 0)),       # reduction weight
        ],
        out_specs=pl.BlockSpec((bh * Wp, C2out), lambda i: (i, 0)),
        compiler_params=pltpu.CompilerParams(dimension_semantics=("parallel",)),
    )(v, gamma2, beta2, w2)

    out = out2d.reshape(B, Ho_pad, Wp, C2out)[:, :Ho, :Wo, :]
    return out


# ----------------------------- pure-JAX reference -------------------------------
def patch_merging_reference(x, norm_w, norm_b, reduction_w):
    B, H, W, C = x.shape
    xp = jnp.pad(x, ((0, 0), (0, H % 2), (0, W % 2), (0, 0)))
    x0 = xp[:, 0::2, 0::2, :]
    x1 = xp[:, 1::2, 0::2, :]
    x2 = xp[:, 0::2, 1::2, :]
    x3 = xp[:, 1::2, 1::2, :]
    m = jnp.concatenate([x0, x1, x2, x3], axis=-1)
    mu = m.mean(-1, keepdims=True)
    var = ((m - mu) ** 2).mean(-1, keepdims=True)
    mn = (m - mu) / jnp.sqrt(var + LN_EPS) * norm_w + norm_b
    return mn @ reduction_w.T


# ----------------------------------- main ---------------------------------------
if __name__ == "__main__":
    key = jax.random.PRNGKey(0)
    k0, k1, k2, k3, k4 = jax.random.split(key, 5)

    DIM = 64                      # PatchMerging dim -> LayerNorm(4*dim), Linear(4*dim, 2*dim)
    B, H, W = 2, 16, 16

    x = jax.random.normal(k0, (B, H, W, DIM), jnp.float32)
    norm_w = 1.0 + 0.05 * jax.random.normal(k1, (4 * DIM,), jnp.float32)
    norm_b = 0.05 * jax.random.normal(k2, (4 * DIM,), jnp.float32)
    reduction_w = 0.05 * jax.random.normal(k3, (2 * DIM, 4 * DIM), jnp.float32)

    out = jax.block_until_ready(patch_merging_pallas(x, norm_w, norm_b, reduction_w))
    ref = jax.block_until_ready(patch_merging_reference(x, norm_w, norm_b, reduction_w))
    assert out.shape == (B, H // 2, W // 2, 2 * DIM)
    max_diff = float(jnp.max(jnp.abs(out - ref)))
    if not np.isfinite(max_diff) or max_diff > 1e-3:
        raise SystemExit(f"mismatch vs reference (even shape): max abs diff {max_diff:e}")

    # odd spatial dims exercise the F.pad(H%2, W%2) path
    x_odd = jax.random.normal(k4, (B, 15, 17, DIM), jnp.float32)
    out_o = jax.block_until_ready(patch_merging_pallas(x_odd, norm_w, norm_b, reduction_w))
    ref_o = jax.block_until_ready(patch_merging_reference(x_odd, norm_w, norm_b, reduction_w))
    assert out_o.shape == (B, 8, 9, 2 * DIM)
    max_diff_o = float(jnp.max(jnp.abs(out_o - ref_o)))
    if not np.isfinite(max_diff_o) or max_diff_o > 1e-3:
        raise SystemExit(f"mismatch vs reference (odd shape): max abs diff {max_diff_o:e}")

    print("KERNEL_OK")
</pallas_src>

<mosaic_0001>
module attributes {stable_mosaic.version = 11 : i64} {
  func.func @_patch_merge_ln_reduce_kernel(%arg0: i32, %arg1: memref<8x2x8x128xf32, #tpu.memory_space<vmem>>, %arg2: memref<2x128xf32, #tpu.memory_space<vmem>>, %arg3: memref<2x128xf32, #tpu.memory_space<vmem>>, %arg4: memref<2x128x128xf32, #tpu.memory_space<vmem>>, %arg5: memref<64x128xf32, #tpu.memory_space<vmem>>) attributes {dimension_semantics = [#tpu.dimension_semantics<parallel>], iteration_bounds = array<i64: 2>, scalar_prefetch = 0 : i64, scratch_operands = 0 : i64, tpu.core_type = #tpu.core_type<tc>, window_params = [{transform_indices = @transform_0, window_bounds = array<i64: 8, 2, 8, 128>}, {pipeline_mode = #tpu.pipeline_mode<synchronous>, transform_indices = @transform_1, window_bounds = array<i64: 2, 128>}, {pipeline_mode = #tpu.pipeline_mode<synchronous>, transform_indices = @transform_2, window_bounds = array<i64: 2, 128>}, {pipeline_mode = #tpu.pipeline_mode<synchronous>, transform_indices = @transform_3, window_bounds = array<i64: 2, 128, 128>}, {transform_indices = @transform_4, window_bounds = array<i64: 64, 128>}]} {
    %c0 = arith.constant 0 : index
    %c0_0 = arith.constant 0 : index
    %c0_1 = arith.constant 0 : index
    %c0_2 = arith.constant 0 : index
    %0 = vector.load %arg1[%c0, %c0_0, %c0_1, %c0_2] : memref<8x2x8x128xf32, #tpu.memory_space<vmem>>, vector<8x2x8x128xf32>
    %1 = vector.extract_strided_slice %0 {offsets = [0, 0, 0, 0], sizes = [8, 1, 8, 128], strides = [1, 1, 1, 1]} : vector<8x2x8x128xf32> to vector<8x1x8x128xf32>
    %2 = vector.shape_cast %1 : vector<8x1x8x128xf32> to vector<8x8x128xf32>
    %3 = vector.shape_cast %2 : vector<8x8x128xf32> to vector<64x128xf32>
    %4 = vector.extract_strided_slice %0 {offsets = [0, 1, 0, 0], sizes = [8, 1, 8, 128], strides = [1, 1, 1, 1]} : vector<8x2x8x128xf32> to vector<8x1x8x128xf32>
    %5 = vector.shape_cast %4 : vector<8x1x8x128xf32> to vector<8x8x128xf32>
    %6 = vector.shape_cast %5 : vector<8x8x128xf32> to vector<64x128xf32>
    %cst = arith.constant dense<0.000000e+00> : vector<64xf32>
    %7 = vector.multi_reduction <add>, %3, %cst [1] : vector<64x128xf32> to vector<64xf32>
    %8 = vector.shape_cast %7 : vector<64xf32> to vector<64x1xf32>
    %cst_3 = arith.constant dense<0.000000e+00> : vector<64xf32>
    %9 = vector.multi_reduction <add>, %6, %cst_3 [1] : vector<64x128xf32> to vector<64xf32>
    %10 = vector.shape_cast %9 : vector<64xf32> to vector<64x1xf32>
    %11 = arith.addf %8, %10 : vector<64x1xf32>
    %cst_4 = arith.constant 3.906250e-03 : f32
    %12 = vector.broadcast %cst_4 : f32 to vector<64x1xf32>
    %13 = arith.mulf %11, %12 : vector<64x1xf32>
    %14 = vector.broadcast %13 : vector<64x1xf32> to vector<64x128xf32>
    %15 = arith.subf %3, %14 : vector<64x128xf32>
    %16 = vector.broadcast %13 : vector<64x1xf32> to vector<64x128xf32>
    %17 = arith.subf %6, %16 : vector<64x128xf32>
    %18 = arith.mulf %15, %15 : vector<64x128xf32>
    %cst_5 = arith.constant dense<0.000000e+00> : vector<64xf32>
    %19 = vector.multi_reduction <add>, %18, %cst_5 [1] : vector<64x128xf32> to vector<64xf32>
    %20 = vector.shape_cast %19 : vector<64xf32> to vector<64x1xf32>
    %21 = arith.mulf %17, %17 : vector<64x128xf32>
    %cst_6 = arith.constant dense<0.000000e+00> : vector<64xf32>
    %22 = vector.multi_reduction <add>, %21, %cst_6 [1] : vector<64x128xf32> to vector<64xf32>
    %23 = vector.shape_cast %22 : vector<64xf32> to vector<64x1xf32>
    %24 = arith.addf %20, %23 : vector<64x1xf32>
    %cst_7 = arith.constant 3.906250e-03 : f32
    %25 = vector.broadcast %cst_7 : f32 to vector<64x1xf32>
    %26 = arith.mulf %24, %25 : vector<64x1xf32>
    %cst_8 = arith.constant 9.99999974E-6 : f32
    %27 = vector.broadcast %cst_8 : f32 to vector<64x1xf32>
    %28 = arith.addf %26, %27 : vector<64x1xf32>
    %29 = math.rsqrt %28 : vector<64x1xf32>
    %30 = vector.broadcast %29 : vector<64x1xf32> to vector<64x128xf32>
    %31 = arith.mulf %15, %30 : vector<64x128xf32>
    %c0_9 = arith.constant 0 : index
    %c0_10 = arith.constant 0 : index
    %32 = vector.load %arg2[%c0_9, %c0_10] : memref<2x128xf32, #tpu.memory_space<vmem>>, vector<1x128xf32>
    %33 = vector.shape_cast %32 : vector<1x128xf32> to vector<128xf32>
    %34 = vector.shape_cast %33 : vector<128xf32> to vector<1x128xf32>
    %35 = vector.broadcast %34 : vector<1x128xf32> to vector<64x128xf32>
    %36 = arith.mulf %31, %35 : vector<64x128xf32>
    %c0_11 = arith.constant 0 : index
    %c0_12 = arith.constant 0 : index
    %37 = vector.load %arg3[%c0_11, %c0_12] : memref<2x128xf32, #tpu.memory_space<vmem>>, vector<1x128xf32>
    %38 = vector.shape_cast %37 : vector<1x128xf32> to vector<128xf32>
    %39 = vector.shape_cast %38 : vector<128xf32> to vector<1x128xf32>
    %40 = vector.broadcast %39 : vector<1x128xf32> to vector<64x128xf32>
    %41 = arith.addf %36, %40 : vector<64x128xf32>
    %42 = vector.broadcast %29 : vector<64x1xf32> to vector<64x128xf32>
    %43 = arith.mulf %17, %42 : vector<64x128xf32>
    %c1 = arith.constant 1 : index
    %c0_13 = arith.constant 0 : index
    %44 = vector.load %arg2[%c1, %c0_13] : memref<2x128xf32, #tpu.memory_space<vmem>>, vector<1x128xf32>
    %45 = vector.shape_cast %44 : vector<1x128xf32> to vector<128xf32>
    %46 = vector.shape_cast %45 : vector<128xf32> to vector<1x128xf32>
    %47 = vector.broadcast %46 : vector<1x128xf32> to vector<64x128xf32>
    %48 = arith.mulf %43, %47 : vector<64x128xf32>
    %c1_14 = arith.constant 1 : index
    %c0_15 = arith.constant 0 : index
    %49 = vector.load %arg3[%c1_14, %c0_15] : memref<2x128xf32, #tpu.memory_space<vmem>>, vector<1x128xf32>
    %50 = vector.shape_cast %49 : vector<1x128xf32> to vector<128xf32>
    %51 = vector.shape_cast %50 : vector<128xf32> to vector<1x128xf32>
    %52 = vector.broadcast %51 : vector<1x128xf32> to vector<64x128xf32>
    %53 = arith.addf %48, %52 : vector<64x128xf32>
    %c0_16 = arith.constant 0 : index
    %c0_17 = arith.constant 0 : index
    %c0_18 = arith.constant 0 : index
    %54 = vector.load %arg4[%c0_16, %c0_17, %c0_18] : memref<2x128x128xf32, #tpu.memory_space<vmem>>, vector<1x128x128xf32>
    %55 = vector.shape_cast %54 : vector<1x128x128xf32> to vector<128x128xf32>
    %cst_19 = arith.constant dense<0.000000e+00> : vector<64x128xf32>
    %56 = tpu.matmul %41, %55, %cst_19 {dimension_numbers = #tpu.dot_dimension_numbers<[1], [0], [0], [1], [0, 0, 1, 1], [], []>} : vector<64x128xf32>, vector<128x128xf32>, vector<64x128xf32> -> vector<64x128xf32>
    %c1_20 = arith.constant 1 : index
    %c0_21 = arith.constant 0 : index
    %c0_22 = arith.constant 0 : index
    %57 = vector.load %arg4[%c1_20, %c0_21, %c0_22] : memref<2x128x128xf32, #tpu.memory_space<vmem>>, vector<1x128x128xf32>
    %58 = vector.shape_cast %57 : vector<1x128x128xf32> to vector<128x128xf32>
    %cst_23 = arith.constant dense<0.000000e+00> : vector<64x128xf32>
    %59 = tpu.matmul %53, %58, %cst_23 {dimension_numbers = #tpu.dot_dimension_numbers<[1], [0], [0], [1], [0, 0, 1, 1], [], []>} : vector<64x128xf32>, vector<128x128xf32>, vector<64x128xf32> -> vector<64x128xf32>
    %60 = arith.addf %56, %59 : vector<64x128xf32>
    %c0_24 = arith.constant 0 : index
    %c0_25 = arith.constant 0 : index
    %61 = vector.load %arg5[%c0_24, %c0_25] : memref<64x128xf32, #tpu.memory_space<vmem>>, vector<64x128xf32>
    tpu.vector_store %arg5[%c0_24, %c0_25], %60 {strides = array<i32>} : memref<64x128xf32, #tpu.memory_space<vmem>>, vector<64x128xf32>,
    return
  }
  func.func @transform_0(%arg0: i32) -> (i32, i32, i32, i32) {
    %c0_i32 = arith.constant 0 : i32
    %c0_i32_0 = arith.constant 0 : i32
    %c0_i32_1 = arith.constant 0 : i32
    %c0_i32_2 = arith.constant 0 : i32
    return %arg0, %c0_i32, %c0_i32_0, %c0_i32_1 : i32, i32, i32, i32
  }
  func.func @transform_1(%arg0: i32) -> (i32, i32) {
    %c0_i32 = arith.constant 0 : i32
    %c0_i32_0 = arith.constant 0 : i32
    %c0_i32_1 = arith.constant 0 : i32
    return %c0_i32, %c0_i32_0 : i32, i32
  }
  func.func @transform_2(%arg0: i32) -> (i32, i32) {
    %c0_i32 = arith.constant 0 : i32
    %c0_i32_0 = arith.constant 0 : i32
    %c0_i32_1 = arith.constant 0 : i32
    return %c0_i32, %c0_i32_0 : i32, i32
  }
  func.func @transform_3(%arg0: i32) -> (i32, i32, i32) {
    %c0_i32 = arith.constant 0 : i32
    %c0_i32_0 = arith.constant 0 : i32
    %c0_i32_1 = arith.constant 0 : i32
    %c0_i32_2 = arith.constant 0 : i32
    return %c0_i32, %c0_i32_0, %c0_i32_1 : i32, i32, i32
  }
  func.func @transform_4(%arg0: i32) -> (i32, i32) {
    %c0_i32 = arith.constant 0 : i32
    %c0_i32_0 = arith.constant 0 : i32
    return %arg0, %c0_i32 : i32, i32
  }
}

</mosaic_0001>

<llo_original>
// kernel: tpu_custom_call.1
$region0: #{tpu_custom_call.1}
  #allocation0 [shape = 'u32[]', space=smem, size = 0x4, offset = 0x4, fixed_abs, tag = 'smem constant byte address 0x4 - core index']
  #allocation1 [shape = 'u32[72,128]{1,0:T(1,128)}', space=vmem, size = 0x9000, scoped, tag = 'internal scratch']
  %s0 = inlined_call_operand.hbm [shape: f32[16,2,8,128], index: 0, kind: input, shape index: {}]
  %s1 = inlined_call_operand.hbm [shape: f32[2,128], index: 1, kind: input, shape index: {}]
  %s2 = inlined_call_operand.hbm [shape: f32[2,128], index: 2, kind: input, shape index: {}]
  %s3 = inlined_call_operand.hbm [shape: f32[2,128,128], index: 3, kind: input, shape index: {}]
  %s4 = inlined_call_operand.hbm [shape: f32[128,128], index: 4, kind: output, shape index: {}]
  %s5 = sld [smem:[#allocation0]]
  $region65: #{tpu_custom_call.1} parent=0
    _
  %s7 = ssub.s32 1, %s5
  %s8 = scalar_select 0, %s7, %s5
  $region1: #{tpu_custom_call.1} parent=0
    #allocation2 [shape = 'u8[131072]{0}', space=vmem, size = 0x20000, scoped, tag = 'input window, operand 0']
    #allocation3 [shape = 's32[2]{0}', space=sflag, size = 0x8, scoped, tag = 'scoped memory for tpu_custom_call.1']
    #allocation4 [shape = 's32[2]{0}', space=sflag, size = 0x8, scoped, tag = 'scoped memory for tpu_custom_call.1']
    #allocation5 [shape = 'u8[1024]{0}', space=vmem, size = 0x400, scoped, tag = 'input window, operand 1, single buffered']
    #allocation6 [shape = 's32[1]{0}', space=sflag, size = 0x4, scoped, tag = 'scoped memory for tpu_custom_call.1']
    #allocation7 [shape = 'u8[1024]{0}', space=vmem, size = 0x400, scoped, tag = 'input window, operand 2, single buffered']
    #allocation8 [shape = 'u8[131072]{0}', space=vmem, size = 0x20000, scoped, tag = 'input window, operand 3, single buffered']
    #allocation9 [shape = 's32[1]{0}', space=sflag, size = 0x4, scoped, tag = 'scoped memory for tpu_custom_call.1']
    #allocation10 [shape = 'u8[65536]{0}', space=vmem, size = 0x10000, scoped, tag = 'output window, operand 0']
    %9 = vsyncpa [#allocation3], 0
    %s10 = scalar_lea.sflag [#allocation3], 1
    %11 = vsyncpa %s10, 0
    %12 = vsyncpa [#allocation6], 0
    %13 = vsyncpa [#allocation9], 0
    %14 = vsyncpa [#allocation4], 0
    %s15 = scalar_lea.sflag [#allocation4], 1
    %16 = vsyncpa %s15, 0
    loop: start=0, step=1, limit=4
    $region2: #{tpu_custom_call.1} parent=1 // loop_pre_header
      _
    $region3: #{tpu_custom_call.1} parent=1 // loop_header
      %s18 = sphi 0, %s22
      %p19 = scmp.ge.s32.totalorder %s18, 4
      %s28 = sphi 0, %s30
      %s31 = sphi 0, %s28
      %s32 = sphi 0, %s31
      %s48 = sphi 0, %s32
      %s52 = sphi 0, %s52
      %s54 = sphi 0, %s52
      %s55 = sphi 0, %s54
      %s69 = sphi 0, %s55
      %s73 = sphi 0, %s73
      %s75 = sphi 0, %s73
      %s76 = sphi 0, %s75
      %s90 = sphi 0, %s76
      %s94 = sphi 0, %s94
      %s96 = sphi 0, %s94
      %s97 = sphi 0, %s96
      %s111 = sphi 0, %s97
      %s117 = sphi 0, %s119
      %s120 = sphi 0, %s117
      %s121 = sphi 0, %s120
      %s137 = sphi 0, %s121
    $region4: #{tpu_custom_call.1} parent=1 // loop_header_branch
      %21 = sbr.rel (%p19) target = $region8
    $region5: #{tpu_custom_call.1} parent=1 // loop_body
      %s23 = ssub.s32 %s18, 1
      %s24 = ssub.s32 %s18, 2
      %s25 = sadd.s32 %s18, 1
      %s26 = ssub.s32 %s18, %s25
      %p27 = scmp.eq.s32.totalorder %s26, 0
      %s29 = sadd.s32 %s28, 1
      %s30 = scalar_select %p27, %s28, %s29
      %p33 = pneg %p27
      %p34 = scmp.eq.s32.totalorder %s18, 1
      %p35 = por %p33, %p34
      %p36 = scmp.ne.s32.totalorder %s28, %s31
      %p37 = scmp.eq.s32.totalorder %s18, 0
      %p38 = por %p36, %p37
      %p39 = scmp.ne.s32.totalorder %s28, %s31
      %p40 = scmp.eq.s32.totalorder %s23, 1
      %p41 = por %p39, %p40
      %p42 = scmp.ne.s32.totalorder %s31, %s32
      %p43 = scmp.eq.s32.totalorder %s23, 0
      %p44 = por %p42, %p43
      %p45 = scmp.ne.s32.totalorder %s31, %s32
      %p46 = scmp.eq.s32.totalorder %s24, 1
      %p47 = por %p45, %p46
      %p49 = scmp.ne.s32.totalorder %s32, %s48
      %p50 = scmp.eq.s32.totalorder %s24, 0
      %p51 = por %p49, %p50
      %s53 = sadd.s32 %s52, 1
      %p56 = scmp.eq.s32.totalorder %s18, 1
      %p57 = scmp.ne.s32.totalorder %s52, %s54
      %p58 = scmp.eq.s32.totalorder %s18, 0
      %p59 = por %p57, %p58
      %p60 = scmp.ne.s32.totalorder %s52, %s54
      %p61 = scmp.eq.s32.totalorder %s23, 1
      %p62 = por %p60, %p61
      %p63 = scmp.ne.s32.totalorder %s54, %s55
      %p64 = scmp.eq.s32.totalorder %s23, 0
      %p65 = por %p63, %p64
      %p66 = scmp.ne.s32.totalorder %s54, %s55
      %p67 = scmp.eq.s32.totalorder %s24, 1
      %p68 = por %p66, %p67
      %p70 = scmp.ne.s32.totalorder %s55, %s69
      %p71 = scmp.eq.s32.totalorder %s24, 0
      %p72 = por %p70, %p71
      %s74 = sadd.s32 %s73, 1
      %p77 = scmp.eq.s32.totalorder %s18, 1
      %p78 = scmp.ne.s32.totalorder %s73, %s75
      %p79 = scmp.eq.s32.totalorder %s18, 0
      %p80 = por %p78, %p79
      %p81 = scmp.ne.s32.totalorder %s73, %s75
      %p82 = scmp.eq.s32.totalorder %s23, 1
      %p83 = por %p81, %p82
      %p84 = scmp.ne.s32.totalorder %s75, %s76
      %p85 = scmp.eq.s32.totalorder %s23, 0
      %p86 = por %p84, %p85
      %p87 = scmp.ne.s32.totalorder %s75, %s76
      %p88 = scmp.eq.s32.totalorder %s24, 1
      %p89 = por %p87, %p88
      %p91 = scmp.ne.s32.totalorder %s76, %s90
      %p92 = scmp.eq.s32.totalorder %s24, 0
      %p93 = por %p91, %p92
      %s95 = sadd.s32 %s94, 1
      %p98 = scmp.eq.s32.totalorder %s18, 1
      %p99 = scmp.ne.s32.totalorder %s94, %s96
      %p100 = scmp.eq.s32.totalorder %s18, 0
      %p101 = por %p99, %p100
      %p102 = scmp.ne.s32.totalorder %s94, %s96
      %p103 = scmp.eq.s32.totalorder %s23, 1
      %p104 = por %p102, %p103
      %p105 = scmp.ne.s32.totalorder %s96, %s97
      %p106 = scmp.eq.s32.totalorder %s23, 0
      %p107 = por %p105, %p106
      %p108 = scmp.ne.s32.totalorder %s96, %s97
      %p109 = scmp.eq.s32.totalorder %s24, 1
      %p110 = por %p108, %p109
      %p112 = scmp.ne.s32.totalorder %s97, %s111
      %p113 = scmp.eq.s32.totalorder %s24, 0
      %p114 = por %p112, %p113
      %s115 = ssub.s32 %s18, %s25
      %p116 = scmp.eq.s32.totalorder %s115, 0
      %s118 = sadd.s32 %s117, 1
      %s119 = scalar_select %p116, %s117, %s118
      %p122 = pneg %p116
      %p123 = scmp.eq.s32.totalorder %s18, 1
      %p124 = por %p122, %p123
      %p125 = scmp.ne.s32.totalorder %s117, %s120
      %p126 = scmp.eq.s32.totalorder %s18, 0
      %p127 = por %p125, %p126
      %p128 = scmp.ne.s32.totalorder %s117, %s120
      %p129 = scmp.eq.s32.totalorder %s23, 1
      %p130 = por %p128, %p129
      %p131 = scmp.ne.s32.totalorder %s120, %s121
      %p132 = scmp.eq.s32.totalorder %s23, 0
      %p133 = por %p131, %p132
      %p134 = scmp.ne.s32.totalorder %s120, %s121
      %p135 = scmp.eq.s32.totalorder %s24, 1
      %p136 = por %p134, %p135
      %p138 = scmp.ne.s32.totalorder %s121, %s137
      %p139 = scmp.eq.s32.totalorder %s24, 0
      %p140 = por %p138, %p139
      %p141 = scmp.le.s32.totalorder 1, %s18
      %p142 = scmp.lt.s32.totalorder %s18, 3
      %p143 = pnand %p141, %p142
      %p144 = pneg %p143
      // Predicated region
      $region9: #{tpu_custom_call.1} parent=5 // pred_check
        _
      $region10: #{tpu_custom_call.1} parent=5 // pred_check_branch
        %146 = sbr.rel (%p143) target = $region12
      $region11: #{tpu_custom_call.1} parent=5 // pred_region
        %s147 = ssub.s32 %s18, 1
        // Predicated region
        $region13: #{tpu_custom_call.1} parent=11 // pred_check
          %p148 = pneg %p65
        $region14: #{tpu_custom_call.1} parent=11 // pred_check_branch
          %150 = sbr.rel (%p148) target = $region16
        $region15: #{tpu_custom_call.1} parent=11 // pred_region
          %152 = vsyncadd [#allocation6], 0
          %s154 = sshll.u32 %s1, 4
          %s155 = int_to_ptr.hbm [resolvable:$true] %s154
          %s156 = sshll.u32 [#allocation5], 4
          %s157 = int_to_ptr.vmem [resolvable:$true] %s156
          %159 = dma.hbm_to_vmem [thread:$0]  %s155, 32, %s157, [#allocation6]
        $region16: #{tpu_custom_call.1} parent=11 // pred_fallthru
          _
        // Predicated region
        $region17: #{tpu_custom_call.1} parent=11 // pred_check
          %p160 = pneg %p86
        $region18: #{tpu_custom_call.1} parent=11 // pred_check_branch
          %162 = sbr.rel (%p160) target = $region20
        $region19: #{tpu_custom_call.1} parent=11 // pred_region
          %164 = vsyncadd [#allocation6], 0
          %s166 = sshll.u32 %s2, 4
          %s167 = int_to_ptr.hbm [resolvable:$true] %s166
          %s168 = sshll.u32 [#allocation7], 4
          %s169 = int_to_ptr.vmem [resolvable:$true] %s168
          %171 = dma.hbm_to_vmem [thread:$0]  %s167, 32, %s169, [#allocation6]
        $region20: #{tpu_custom_call.1} parent=11 // pred_fallthru
          _
        // Predicated region
        $region21: #{tpu_custom_call.1} parent=11 // pred_check
          %p172 = pneg %p107
        $region22: #{tpu_custom_call.1} parent=11 // pred_check_branch
          %174 = sbr.rel (%p172) target = $region24
        $region23: #{tpu_custom_call.1} parent=11 // pred_region
          %176 = vsyncadd [#allocation9], 0
          %s177 = sshll.u32 %s3, 4
          %s178 = int_to_ptr.hbm [resolvable:$true] %s177
          %s179 = sshll.u32 [#allocation8], 4
          %s180 = int_to_ptr.vmem [resolvable:$true] %s179
          %185 = dma.hbm_to_vmem [thread:$0]  %s178, 4096, %s180, [#allocation9], 128, 128, 8
        $region24: #{tpu_custom_call.1} parent=11 // pred_fallthru
          _
      $region12: #{tpu_custom_call.1} parent=5 // pred_fallthru
        _
      %p186 = scmp.lt.s32.totalorder %s18, 2
      // Predicated region
      $region25: #{tpu_custom_call.1} parent=5 // pred_check
        %p187 = pneg %p186
      $region26: #{tpu_custom_call.1} parent=5 // pred_check_branch
        %189 = sbr.rel (%p187) target = $region28
      $region27: #{tpu_custom_call.1} parent=5 // pred_region
        // Predicated region
        $region29: #{tpu_custom_call.1} parent=27 // pred_check
          %p190 = pneg %p38
        $region30: #{tpu_custom_call.1} parent=27 // pred_check_branch
          %192 = sbr.rel (%p190) target = $region32
        $region31: #{tpu_custom_call.1} parent=27 // pred_region
          %s193 = sand.u32 %s28, 1
          %s194 = scalar_lea.sflag [#allocation3], %s193
          %s195 = sand.u32 %s28, 1
          %s196 = smul.addr %s195, 128
          %s197 = scalar_lea.vmem [#allocation2], %s196
          %s198 = smul.u32 8, %s18
          %200 = vsyncadd %s194, 0
          %s201 = smul.addr %s198, 2
          %s202 = smul.addr %s201, 8
          %s203 = scalar_lea.hbm %s0, %s202
          %s204 = sshll.u32 %s203, 4
          %s205 = int_to_ptr.hbm [resolvable:$true] %s204
          %s206 = sshll.u32 %s197, 4
          %s207 = int_to_ptr.vmem [resolvable:$true] %s206
          %212 = dma.hbm_to_vmem [thread:$0]  %s205, 2048, %s207, %s194, 128, 128, 8
        $region32: #{tpu_custom_call.1} parent=27 // pred_fallthru
          _
      $region28: #{tpu_custom_call.1} parent=5 // pred_fallthru
        _
      %p213 = scmp.le.s32.totalorder 1, %s18
      %p214 = scmp.lt.s32.totalorder %s18, 3
      %p215 = pnand %p213, %p214
      %p216 = pneg %p215
      // Predicated region
      $region33: #{tpu_custom_call.1} parent=5 // pred_check
        _
      $region34: #{tpu_custom_call.1} parent=5 // pred_check_branch
        %218 = sbr.rel (%p215) target = $region36
      $region35: #{tpu_custom_call.1} parent=5 // pred_region
        %s219 = ssub.s32 %s18, 1
        %s220 = sand.u32 %s31, 1
        %s221 = scalar_lea.sflag [#allocation3], %s220
        %s222 = sand.u32 %s31, 1
        %s223 = smul.addr %s222, 128
        %s224 = scalar_lea.vmem [#allocation2], %s223
        // Predicated region
        $region37: #{tpu_custom_call.1} parent=35 // pred_check
          %p225 = pneg %p44
        $region38: #{tpu_custom_call.1} parent=35 // pred_check_branch
          %227 = sbr.rel (%p225) target = $region40
        $region39: #{tpu_custom_call.1} parent=35 // pred_region
          %229 = dma.done %s221, 2048
        $region40: #{tpu_custom_call.1} parent=35 // pred_fallthru
          _
        // Predicated region
        $region41: #{tpu_custom_call.1} parent=35 // pred_check
          %p230 = pneg %p65
        $region42: #{tpu_custom_call.1} parent=35 // pred_check_branch
          %232 = sbr.rel (%p230) target = $region44
        $region43: #{tpu_custom_call.1} parent=35 // pred_region
          %234 = dma.done [#allocation6], 32
        $region44: #{tpu_custom_call.1} parent=35 // pred_fallthru
          _
        // Predicated region
        $region45: #{tpu_custom_call.1} parent=35 // pred_check
          %p235 = pneg %p86
        $region46: #{tpu_custom_call.1} parent=35 // pred_check_branch
          %237 = sbr.rel (%p235) target = $region48
        $region47: #{tpu_custom_call.1} parent=35 // pred_region
          %239 = dma.done [#allocation6], 32
        $region48: #{tpu_custom_call.1} parent=35 // pred_fallthru
          _
        // Predicated region
        $region49: #{tpu_custom_call.1} parent=35 // pred_check
          %p240 = pneg %p107
        $region50: #{tpu_custom_call.1} parent=35 // pred_check_branch
          %242 = sbr.rel (%p240) target = $region52
        $region51: #{tpu_custom_call.1} parent=35 // pred_region
          %244 = dma.done [#allocation9], 4096
        $region52: #{tpu_custom_call.1} parent=35 // pred_fallthru
          _
        %s245 = sand.u32 %s31, 1
        %s246 = scalar_lea.sflag [#allocation3], %s245
        %s247 = sand.u32 %s31, 1
        %s248 = smul.addr %s247, 128
        %s249 = scalar_lea.vmem [#allocation2], %s248
        %p250 = pneg %p44
        %p251 = pneg %p41
        %p252 = pneg %p65
        %p253 = pneg %p62
        %p254 = pneg %p86
        %p255 = pneg %p83
        %p256 = pneg %p107
        %p257 = pneg %p104
        %p258 = pneg %p133
        %p259 = pneg %p130
        %s260 = sand.u32 %s120, 1
        %s261 = scalar_lea.sflag [#allocation4], %s260
        %s262 = sand.u32 %s120, 1
        %s263 = smul.addr %s262, 64
        %s264 = scalar_lea.vmem [#allocation10], %s263
        %s265 = smul.u32 8, %s23
        %s266 = smul.u32 8, %s23
        %v267 = vld [vmem:[%s224] sm:$0xff]
        %v268 = vld [vmem:[%s224 + $0x8] sm:$0xff]
        %v269 = vld [vmem:[%s224 + $0x10] sm:$0xff]
        %v270 = vld [vmem:[%s224 + $0x18] sm:$0xff]
        %v271 = vld [vmem:[%s224 + $0x20] sm:$0xff]
        %v272 = vld [vmem:[%s224 + $0x28] sm:$0xff]
        %v273 = vld [vmem:[%s224 + $0x30] sm:$0xff]
        %v274 = vld [vmem:[%s224 + $0x38] sm:$0xff]
        %v275 = vld [vmem:[%s224 + $0x40] sm:$0xff]
        %v276 = vld [vmem:[%s224 + $0x48] sm:$0xff]
        %v277 = vld [vmem:[%s224 + $0x50] sm:$0xff]
        %v278 = vld [vmem:[%s224 + $0x58] sm:$0xff]
        %v279 = vld [vmem:[%s224 + $0x60] sm:$0xff]
        %v280 = vld [vmem:[%s224 + $0x68] sm:$0xff]
        %v281 = vld [vmem:[%s224 + $0x70] sm:$0xff]
        %v282 = vld [vmem:[%s224 + $0x78] sm:$0xff]
        %283 = vadd.xlane.f32.xlu0 %v267
        %v284 = vpop.xlane.xlu0 %283
        %285 = vadd.xlane.f32.xlu0 %v269
        %v286 = vpop.xlane.xlu0 %285
        %287 = vadd.xlane.f32.xlu0 %v271
        %v288 = vpop.xlane.xlu0 %287
        %289 = vadd.xlane.f32.xlu0 %v273
        %v290 = vpop.xlane.xlu0 %289
        %291 = vadd.xlane.f32.xlu0 %v275
        %v292 = vpop.xlane.xlu0 %291
        %293 = vadd.xlane.f32.xlu0 %v277
        %v294 = vpop.xlane.xlu0 %293
        %295 = vadd.xlane.f32.xlu0 %v279
        %v296 = vpop.xlane.xlu0 %295
        %297 = vadd.xlane.f32.xlu0 %v281
        %v298 = vpop.xlane.xlu0 %297
        %299 = vadd.xlane.f32.xlu0 %v268
        %v300 = vpop.xlane.xlu0 %299
        %301 = vadd.xlane.f32.xlu0 %v270
        %v302 = vpop.xlane.xlu0 %301
        %303 = vadd.xlane.f32.xlu0 %v272
        %v304 = vpop.xlane.xlu0 %303
        %305 = vadd.xlane.f32.xlu0 %v274
        %v306 = vpop.xlane.xlu0 %305
        %307 = vadd.xlane.f32.xlu0 %v276
        %v308 = vpop.xlane.xlu0 %307
        %309 = vadd.xlane.f32.xlu0 %v278
        %v310 = vpop.xlane.xlu0 %309
        %311 = vadd.xlane.f32.xlu0 %v280
        %v312 = vpop.xlane.xlu0 %311
        %313 = vadd.xlane.f32.xlu0 %v282
        %v314 = vpop.xlane.xlu0 %313
        %v315 = vadd.f32 %v284, %v300
        %v316 = vadd.f32 %v286, %v302
        %v317 = vadd.f32 %v288, %v304
        %v318 = vadd.f32 %v290, %v306
        %v319 = vadd.f32 %v292, %v308
        %v320 = vadd.f32 %v294, %v310
        %v321 = vadd.f32 %v296, %v312
        %v322 = vadd.f32 %v298, %v314
        %v323 = vmul.f32 %v315, 0.00390625
        %v324 = vmul.f32 %v316, 0.00390625
        %v325 = vmul.f32 %v317, 0.00390625
        %v326 = vmul.f32 %v318, 0.00390625
        %v327 = vmul.f32 %v319, 0.00390625
        %v328 = vmul.f32 %v320, 0.00390625
        %v329 = vmul.f32 %v321, 0.00390625
        %v330 = vmul.f32 %v322, 0.00390625
        %v331 = vsub.f32 %v267, %v323
        %v332 = vsub.f32 %v269, %v324
        %v333 = vsub.f32 %v271, %v325
        %v334 = vsub.f32 %v273, %v326
        %v335 = vsub.f32 %v275, %v327
        %v336 = vsub.f32 %v277, %v328
        %v337 = vsub.f32 %v279, %v329
        %v338 = vsub.f32 %v281, %v330
        %v339 = vsub.f32 %v268, %v323
        %v340 = vsub.f32 %v270, %v324
        %v341 = vsub.f32 %v272, %v325
        %v342 = vsub.f32 %v274, %v326
        %v343 = vsub.f32 %v276, %v327
        %v344 = vsub.f32 %v278, %v328
        %v345 = vsub.f32 %v280, %v329
        %v346 = vsub.f32 %v282, %v330
        %v347 = vmul.f32 %v331, %v331
        %v348 = vmul.f32 %v332, %v332
        %v349 = vmul.f32 %v333, %v333
        %v350 = vmul.f32 %v334, %v334
        %v351 = vmul.f32 %v335, %v335
        %v352 = vmul.f32 %v336, %v336
        %v353 = vmul.f32 %v337, %v337
        %v354 = vmul.f32 %v338, %v338
        %355 = vadd.xlane.f32.xlu0 %v347
        %v356 = vpop.xlane.xlu0 %355
        %357 = vadd.xlane.f32.xlu0 %v348
        %v358 = vpop.xlane.xlu0 %357
        %359 = vadd.xlane.f32.xlu0 %v349
        %v360 = vpop.xlane.xlu0 %359
        %361 = vadd.xlane.f32.xlu0 %v350
        %v362 = vpop.xlane.xlu0 %361
        %363 = vadd.xlane.f32.xlu0 %v351
        %v364 = vpop.xlane.xlu0 %363
        %365 = vadd.xlane.f32.xlu0 %v352
        %v366 = vpop.xlane.xlu0 %365
        %367 = vadd.xlane.f32.xlu0 %v353
        %v368 = vpop.xlane.xlu0 %367
        %369 = vadd.xlane.f32.xlu0 %v354
        %v370 = vpop.xlane.xlu0 %369
        %v371 = vmul.f32 %v339, %v339
        %v372 = vmul.f32 %v340, %v340
        %v373 = vmul.f32 %v341, %v341
        %v374 = vmul.f32 %v342, %v342
        %v375 = vmul.f32 %v343, %v343
        %v376 = vmul.f32 %v344, %v344
        %v377 = vmul.f32 %v345, %v345
        %v378 = vmul.f32 %v346, %v346
        %379 = vadd.xlane.f32.xlu0 %v371
        %v380 = vpop.xlane.xlu0 %379
        %381 = vadd.xlane.f32.xlu0 %v372
        %v382 = vpop.xlane.xlu0 %381
        %383 = vadd.xlane.f32.xlu0 %v373
        %v384 = vpop.xlane.xlu0 %383
        %385 = vadd.xlane.f32.xlu0 %v374
        %v386 = vpop.xlane.xlu0 %385
        %387 = vadd.xlane.f32.xlu0 %v375
        %v388 = vpop.xlane.xlu0 %387
        %389 = vadd.xlane.f32.xlu0 %v376
        %v390 = vpop.xlane.xlu0 %389
        %391 = vadd.xlane.f32.xlu0 %v377
        %v392 = vpop.xlane.xlu0 %391
        %393 = vadd.xlane.f32.xlu0 %v378
        %v394 = vpop.xlane.xlu0 %393
        %v395 = vadd.f32 %v356, %v380
        %v396 = vadd.f32 %v358, %v382
        %v397 = vadd.f32 %v360, %v384
        %v398 = vadd.f32 %v362, %v386
        %v399 = vadd.f32 %v364, %v388
        %v400 = vadd.f32 %v366, %v390
        %v401 = vadd.f32 %v368, %v392
        %v402 = vadd.f32 %v370, %v394
        %v403 = vmul.f32 %v395, 0.00390625
        %v404 = vmul.f32 %v396, 0.00390625
        %v405 = vmul.f32 %v397, 0.00390625
        %v406 = vmul.f32 %v398, 0.00390625
        %v407 = vmul.f32 %v399, 0.00390625
        %v408 = vmul.f32 %v400, 0.00390625
        %v409 = vmul.f32 %v401, 0.00390625
        %v410 = vmul.f32 %v402, 0.00390625
        %v411 = vadd.f32 %v403, 1e-05
        %v412 = vadd.f32 %v404, 1e-05
        %v413 = vadd.f32 %v405, 1e-05
        %v414 = vadd.f32 %v406, 1e-05
        %v415 = vadd.f32 %v407, 1e-05
        %v416 = vadd.f32 %v408, 1e-05
        %v417 = vadd.f32 %v409, 1e-05
        %v418 = vadd.f32 %v410, 1e-05
        %v419 = vrsqrt.pop %v411
        %v420 = vmul.f32 %v419, %v411
        %v421 = vmul.f32 %v420, %v419
        %v422 = vmul.f32 0.5, %v421
        %v423 = vsub.f32 1.5, %v422
        %v424 = vmul.f32 %v419, %v423
        %vm425 = vweird.f32 %v411
        %vm426 = vweird.f32 %v419
        %vm427 = vmor %vm425, %vm426
        %v428 = vsel %vm427, %v419, %v424
        %v429 = vrsqrt.pop %v412
        %v430 = vmul.f32 %v429, %v412
        %v431 = vmul.f32 %v430, %v429
        %v432 = vmul.f32 0.5, %v431
        %v433 = vsub.f32 1.5, %v432
        %v434 = vmul.f32 %v429, %v433
        %vm435 = vweird.f32 %v412
        %vm436 = vweird.f32 %v429
        %vm437 = vmor %vm435, %vm436
        %v438 = vsel %vm437, %v429, %v434
        %v439 = vrsqrt.pop %v413
        %v440 = vmul.f32 %v439, %v413
        %v441 = vmul.f32 %v440, %v439
        %v442 = vmul.f32 0.5, %v441
        %v443 = vsub.f32 1.5, %v442
        %v444 = vmul.f32 %v439, %v443
        %vm445 = vweird.f32 %v413
        %vm446 = vweird.f32 %v439
        %vm447 = vmor %vm445, %vm446
        %v448 = vsel %vm447, %v439, %v444
        %v449 = vrsqrt.pop %v414
        %v450 = vmul.f32 %v449, %v414
        %v451 = vmul.f32 %v450, %v449
        %v452 = vmul.f32 0.5, %v451
        %v453 = vsub.f32 1.5, %v452
        %v454 = vmul.f32 %v449, %v453
        %vm455 = vweird.f32 %v414
        %vm456 = vweird.f32 %v449
        %vm457 = vmor %vm455, %vm456
        %v458 = vsel %vm457, %v449, %v454
        %v459 = vrsqrt.pop %v415
        %v460 = vmul.f32 %v459, %v415
        %v461 = vmul.f32 %v460, %v459
        %v462 = vmul.f32 0.5, %v461
        %v463 = vsub.f32 1.5, %v462
        %v464 = vmul.f32 %v459, %v463
        %vm465 = vweird.f32 %v415
        %vm466 = vweird.f32 %v459
        %vm467 = vmor %vm465, %vm466
        %v468 = vsel %vm467, %v459, %v464
        %v469 = vrsqrt.pop %v416
        %v470 = vmul.f32 %v469, %v416
        %v471 = vmul.f32 %v470, %v469
        %v472 = vmul.f32 0.5, %v471
        %v473 = vsub.f32 1.5, %v472
        %v474 = vmul.f32 %v469, %v473
        %vm475 = vweird.f32 %v416
        %vm476 = vweird.f32 %v469
        %vm477 = vmor %vm475, %vm476
        %v478 = vsel %vm477, %v469, %v474
        %v479 = vrsqrt.pop %v417
        %v480 = vmul.f32 %v479, %v417
        %v481 = vmul.f32 %v480, %v479
        %v482 = vmul.f32 0.5, %v481
        %v483 = vsub.f32 1.5, %v482
        %v484 = vmul.f32 %v479, %v483
        %vm485 = vweird.f32 %v417
        %vm486 = vweird.f32 %v479
        %vm487 = vmor %vm485, %vm486
        %v488 = vsel %vm487, %v479, %v484
        %v489 = vrsqrt.pop %v418
        %v490 = vmul.f32 %v489, %v418
        %v491 = vmul.f32 %v490, %v489
        %v492 = vmul.f32 0.5, %v491
        %v493 = vsub.f32 1.5, %v492
        %v494 = vmul.f32 %v489, %v493
        %vm495 = vweird.f32 %v418
        %vm496 = vweird.f32 %v489
        %vm497 = vmor %vm495, %vm496
        %v498 = vsel %vm497, %v489, %v494
        %v499 = vmul.f32 %v331, %v428
        %v500 = vmul.f32 %v332, %v438
        %v501 = vmul.f32 %v333, %v448
        %v502 = vmul.f32 %v334, %v458
        %v503 = vmul.f32 %v335, %v468
        %v504 = vmul.f32 %v336, %v478
        %v505 = vmul.f32 %v337, %v488
        %v506 = vmul.f32 %v338, %v498
        %v507 = vld [vmem:[#allocation5] sm:$0x1]
        %v508 = vperm.slane %v507, 0
        %v509 = vmul.f32 %v499, %v508
        %v510 = vmul.f32 %v500, %v508
        %v511 = vmul.f32 %v501, %v508
        %v512 = vmul.f32 %v502, %v508
        %v513 = vmul.f32 %v503, %v508
        %v514 = vmul.f32 %v504, %v508
        %v515 = vmul.f32 %v505, %v508
        %v516 = vmul.f32 %v506, %v508
        %v517 = vld [vmem:[#allocation7] sm:$0x1]
        %v518 = vperm.slane %v517, 0
        %v519 = vadd.f32 %v509, %v518
        %v520 = vadd.f32 %v510, %v518
        %v521 = vadd.f32 %v511, %v518
        %v522 = vadd.f32 %v512, %v518
        %v523 = vadd.f32 %v513, %v518
        %v524 = vadd.f32 %v514, %v518
        %v525 = vadd.f32 %v515, %v518
        %v526 = vadd.f32 %v516, %v518
        %v527 = vmul.f32 %v339, %v428
        %v528 = vmul.f32 %v340, %v438
        %v529 = vmul.f32 %v341, %v448
        %v530 = vmul.f32 %v342, %v458
        %v531 = vmul.f32 %v343, %v468
        %v532 = vmul.f32 %v344, %v478
        %v533 = vmul.f32 %v345, %v488
        %v534 = vmul.f32 %v346, %v498
        %v535 = vld [vmem:[#allocation5 + $0x1] sm:$0x1]
        %v536 = vperm.slane %v535, 0
        %v537 = vmul.f32 %v527, %v536
        %v538 = vmul.f32 %v528, %v536
        %v539 = vmul.f32 %v529, %v536
        %v540 = vmul.f32 %v530, %v536
        %v541 = vmul.f32 %v531, %v536
        %v542 = vmul.f32 %v532, %v536
        %v543 = vmul.f32 %v533, %v536
        %v544 = vmul.f32 %v534, %v536
        %v545 = vld [vmem:[#allocation7 + $0x1] sm:$0x1]
        %v546 = vperm.slane %v545, 0
        %v547 = vadd.f32 %v537, %v546
        %v548 = vadd.f32 %v538, %v546
        %v549 = vadd.f32 %v539, %v546
        %v550 = vadd.f32 %v540, %v546
        %v551 = vadd.f32 %v541, %v546
        %v552 = vadd.f32 %v542, %v546
        %v553 = vadd.f32 %v543, %v546
        %v554 = vadd.f32 %v544, %v546
        %v555 = vld [vmem:[#allocation8] sm:$0xff]
        %v556 = vld [vmem:[#allocation8 + $0x8] sm:$0xff]
        %v557 = vld [vmem:[#allocation8 + $0x10] sm:$0xff]
        %v558 = vld [vmem:[#allocation8 + $0x18] sm:$0xff]
        %v559 = vld [vmem:[#allocation8 + $0x20] sm:$0xff]
        %v560 = vld [vmem:[#allocation8 + $0x28] sm:$0xff]
        %v561 = vld [vmem:[#allocation8 + $0x30] sm:$0xff]
        %v562 = vld [vmem:[#allocation8 + $0x38] sm:$0xff]
        %v563 = vld [vmem:[#allocation8 + $0x40] sm:$0xff]
        %v564 = vld [vmem:[#allocation8 + $0x48] sm:$0xff]
        %v565 = vld [vmem:[#allocation8 + $0x50] sm:$0xff]
        %v566 = vld [vmem:[#allocation8 + $0x58] sm:$0xff]
        %v567 = vld [vmem:[#allocation8 + $0x60] sm:$0xff]
        %v568 = vld [vmem:[#allocation8 + $0x68] sm:$0xff]
        %v569 = vld [vmem:[#allocation8 + $0x70] sm:$0xff]
        %v570 = vld [vmem:[#allocation8 + $0x78] sm:$0xff]
        %s571 = scalar_lea.vmem [#allocation8], 128
        %v572 = vld [vmem:[%s571] sm:$0xff]
        %v573 = vld [vmem:[%s571 + $0x8] sm:$0xff]
        %v574 = vld [vmem:[%s571 + $0x10] sm:$0xff]
        %v575 = vld [vmem:[%s571 + $0x18] sm:$0xff]
        %v576 = vld [vmem:[%s571 + $0x20] sm:$0xff]
        %v577 = vld [vmem:[%s571 + $0x28] sm:$0xff]
        %v578 = vld [vmem:[%s571 + $0x30] sm:$0xff]
        %v579 = vld [vmem:[%s571 + $0x38] sm:$0xff]
        %v580 = vld [vmem:[%s571 + $0x40] sm:$0xff]
        %v581 = vld [vmem:[%s571 + $0x48] sm:$0xff]
        %v582 = vld [vmem:[%s571 + $0x50] sm:$0xff]
        %v583 = vld [vmem:[%s571 + $0x58] sm:$0xff]
        %v584 = vld [vmem:[%s571 + $0x60] sm:$0xff]
        %v585 = vld [vmem:[%s571 + $0x68] sm:$0xff]
        %v586 = vld [vmem:[%s571 + $0x70] sm:$0xff]
        %v587 = vld [vmem:[%s571 + $0x78] sm:$0xff]
        %588 = vmatpush.msra.mxu0 %v587
        %589 = vmatpush.msra.mxu0 %v586
        %590 = vmatpush.msra.mxu0 %v585
        %591 = vmatpush.msra.mxu0 %v584
        %592 = vmatpush.msra.mxu0 %v583
        %593 = vmatpush.msra.mxu0 %v582
        %594 = vmatpush.msra.mxu0 %v581
        %595 = vmatpush.msra.mxu0 %v580
        %596 = vmatpush.msra.mxu0 %v579
        %597 = vmatpush.msra.mxu0 %v578
        %598 = vmatpush.msra.mxu0 %v577
        %599 = vmatpush.msra.mxu0 %v576
        %600 = vmatpush.msra.mxu0 %v575
        %601 = vmatpush.msra.mxu0 %v574
        %602 = vmatpush.msra.mxu0 %v573
        %603 = vmatpush.msra.mxu0 %v572
        %604 = vmatmul.f32.gmra.mxu0 %v547
        %v605 = vpop.f32.mrf.mxu0
        %v606 = vadd.f32 0.0, %v605
        %607 = vmatmul.f32.gmra.mxu0 %v548
        %v608 = vpop.f32.mrf.mxu0
        %v609 = vadd.f32 0.0, %v608
        %610 = vmatmul.f32.gmra.mxu0 %v549
        %v611 = vpop.f32.mrf.mxu0
        %v612 = vadd.f32 0.0, %v611
        %613 = vmatmul.f32.gmra.mxu0 %v550
        %v614 = vpop.f32.mrf.mxu0
        %v615 = vadd.f32 0.0, %v614
        %616 = vmatmul.f32.gmra.mxu0 %v551
        %v617 = vpop.f32.mrf.mxu0
        %v618 = vadd.f32 0.0, %v617
        %619 = vmatmul.f32.gmra.mxu0 %v552
        %v620 = vpop.f32.mrf.mxu0
        %v621 = vadd.f32 0.0, %v620
        %622 = vmatmul.f32.gmra.mxu0 %v553
        %v623 = vpop.f32.mrf.mxu0
        %v624 = vadd.f32 0.0, %v623
        %625 = vmatmul.f32.gmra.mxu0 %v554
        %v626 = vpop.f32.mrf.mxu0
        %v627 = vadd.f32 0.0, %v626
        %628 = vdwg.mxu0
        %629 = vmatpush.msra.mxu0 %v570
        %630 = vmatpush.msra.mxu0 %v569
        %631 = vmatpush.msra.mxu0 %v568
        %632 = vmatpush.msra.mxu0 %v567
        %633 = vmatpush.msra.mxu0 %v566
        %634 = vmatpush.msra.mxu0 %v565
        %635 = vmatpush.msra.mxu0 %v564
        %636 = vmatpush.msra.mxu0 %v563
        %637 = vmatpush.msra.mxu0 %v562
        %638 = vmatpush.msra.mxu0 %v561
        %639 = vmatpush.msra.mxu0 %v560
        %640 = vmatpush.msra.mxu0 %v559
        %641 = vmatpush.msra.mxu0 %v558
        %642 = vmatpush.msra.mxu0 %v557
        %643 = vmatpush.msra.mxu0 %v556
        %644 = vmatpush.msra.mxu0 %v555
        %645 = vmatmul.f32.gmra.mxu0 %v519
        %v646 = vpop.f32.mrf.mxu0
        %v647 = vadd.f32 %v606, %v646
        %648 = vmatmul.f32.gmra.mxu0 %v520
        %v649 = vpop.f32.mrf.mxu0
        %v650 = vadd.f32 %v609, %v649
        %651 = vmatmul.f32.gmra.mxu0 %v521
        %v652 = vpop.f32.mrf.mxu0
        %v653 = vadd.f32 %v612, %v652
        %654 = vmatmul.f32.gmra.mxu0 %v522
        %v655 = vpop.f32.mrf.mxu0
        %v656 = vadd.f32 %v615, %v655
        %657 = vmatmul.f32.gmra.mxu0 %v523
        %v658 = vpop.f32.mrf.mxu0
        %v659 = vadd.f32 %v618, %v658
        %660 = vmatmul.f32.gmra.mxu0 %v524
        %v661 = vpop.f32.mrf.mxu0
        %v662 = vadd.f32 %v621, %v661
        %663 = vmatmul.f32.gmra.mxu0 %v525
        %v664 = vpop.f32.mrf.mxu0
        %v665 = vadd.f32 %v624, %v664
        %666 = vmatmul.f32.gmra.mxu0 %v526
        %v667 = vpop.f32.mrf.mxu0
        %v668 = vadd.f32 %v627, %v667
        %669 = vdwg.mxu0
        %670 = vst [vmem:[%s264] sm:$0xff] %v647
        %671 = vst [vmem:[%s264 + $0x8] sm:$0xff] %v650
        %672 = vst [vmem:[%s264 + $0x10] sm:$0xff] %v653
        %673 = vst [vmem:[%s264 + $0x18] sm:$0xff] %v656
        %674 = vst [vmem:[%s264 + $0x20] sm:$0xff] %v659
        %675 = vst [vmem:[%s264 + $0x28] sm:$0xff] %v662
        %676 = vst [vmem:[%s264 + $0x30] sm:$0xff] %v665
        %677 = vst [vmem:[%s264 + $0x38] sm:$0xff] %v668
        %s678 = sand.u32 %s120, 1
        %s679 = scalar_lea.sflag [#allocation4], %s678
        %s680 = sand.u32 %s120, 1
        %s681 = smul.addr %s680, 64
        %s682 = scalar_lea.vmem [#allocation10], %s681
        // Predicated region
        $region53: #{tpu_custom_call.1} parent=35 // pred_check
          %p683 = pneg %p130
        $region54: #{tpu_custom_call.1} parent=35 // pred_check_branch
          %685 = sbr.rel (%p683) target = $region56
        $region55: #{tpu_custom_call.1} parent=35 // pred_region
          %s686 = smul.u32 8, %s23
          %688 = vsyncadd %s679, 0
          %s689 = smul.addr %s686, 8
          %s690 = scalar_lea.hbm %s4, %s689
          %s691 = sshll.u32 %s682, 4
          %s692 = int_to_ptr.vmem [resolvable:$true] %s691
          %s693 = sshll.u32 %s690, 4
          %s694 = int_to_ptr.hbm [resolvable:$true] %s693
          %699 = dma.vmem_to_hbm [thread:$0]  %s692, 1024, %s694, %s679, 128, 128, 8
        $region56: #{tpu_custom_call.1} parent=35 // pred_fallthru
          _
      $region36: #{tpu_custom_call.1} parent=5 // pred_fallthru
        _
      %p700 = scmp.le.s32.totalorder 2, %s18
      // Predicated region
      $region57: #{tpu_custom_call.1} parent=5 // pred_check
        %p701 = pneg %p700
      $region58: #{tpu_custom_call.1} parent=5 // pred_check_branch
        %703 = sbr.rel (%p701) target = $region60
      $region59: #{tpu_custom_call.1} parent=5 // pred_region
        %s704 = ssub.s32 %s18, 2
        // Predicated region
        $region61: #{tpu_custom_call.1} parent=59 // pred_check
          %p705 = pneg %p136
        $region62: #{tpu_custom_call.1} parent=59 // pred_check_branch
          %707 = sbr.rel (%p705) target = $region64
        $region63: #{tpu_custom_call.1} parent=59 // pred_region
          %s708 = sand.u32 %s121, 1
          %s709 = scalar_lea.sflag [#allocation4], %s708
          %s710 = sand.u32 %s121, 1
          %s711 = smul.addr %s710, 64
          %s712 = scalar_lea.vmem [#allocation10], %s711
          %714 = dma.done %s709, 1024
        $region64: #{tpu_custom_call.1} parent=59 // pred_fallthru
          _
      $region60: #{tpu_custom_call.1} parent=5 // pred_fallthru
        _
    $region6: #{tpu_custom_call.1} parent=1 // loop_footer
      %s22 = sadd.s32 1, %s18
    $region7: #{tpu_custom_call.1} parent=1 // loop_footer_branch
      %17 = sbr.rel target = $region3
    $region8: #{tpu_custom_call.1} parent=1 // loop_exit
      _
    %715 = vsyncpa [#allocation3], 1
    %s716 = scalar_lea.sflag [#allocation3], 1
    %717 = vsyncpa %s716, 1
    %718 = vsyncpa [#allocation6], 1
    %719 = vsyncpa [#allocation9], 1
    %720 = vsyncpa [#allocation4], 1
    %s721 = scalar_lea.sflag [#allocation4], 1
    %722 = vsyncpa %s721, 1

</llo_original>
